<compile_context>
chip_gen: v5e
topology: v5e:2x2
jax: 0.10.0
libtpu: 0.0.40
codegen_flags: <defaults>
</compile_context>

<pallas_src>
import jax
import jax.numpy as jnp
from jax.experimental import pallas as pl
from jax.experimental.pallas import tpu as pltpu

LANES = 128          # TPU lane width; feature dim (4) is zero-padded to this.
IN_FEATURES = 4
OUT_FEATURES = 4
PARAM_ROWS = 8       # packed param buffer: rows 0..3 = W^T, row 4 = bias, rest 0.


def mycell_kernel(x_ref, h0_ref, wb_ref, out_ref, h_state):
    """One grid step == one timestep of the recurrence.

    x_ref   : (1, B, IN_FEATURES)   unpadded input at time t
    h0_ref  : (B, LANES)            padded initial state (used only at t == 0)
    wb_ref  : (PARAM_ROWS, LANES)   packed W^T (rows 0..3) + bias (row 4), padded
    out_ref : (1, B, LANES)         padded new_h at time t
    h_state : (B, LANES) VMEM scratch, resident across grid steps
    """
    t = pl.program_id(0)

    @pl.when(t == 0)
    def _():
        h_state[...] = h0_ref[...]

    x = x_ref[0]            # (B, IN_FEATURES)
    wb = wb_ref[...]        # (PARAM_ROWS, LANES) — exactly one f32 vreg

    # Linear: y = x @ W^T + b, unrolled over K=4 on the VPU (no MXU at 4x4).
    y = wb[IN_FEATURES:IN_FEATURES + 1, :] + x[:, 0:1] * wb[0:1, :]
    for k in range(1, IN_FEATURES):
        y = y + x[:, k:k + 1] * wb[k:k + 1, :]
    # Padded lanes of wb are exactly zero => padded lanes of y are exactly zero,
    # so h_state's padded lanes stay zero forever (tanh(0 + 0) == 0).

    # Decision gate: y if sum(y) > 0 else -y, as a scalar sign multiply.
    # Reduce restricted to the valid lanes; strict '> 0' matches torch (sum==0 -> -y).
    s = jnp.sum(y[:, :OUT_FEATURES], keepdims=True)          # (1, 1)
    sign = jnp.where(s > 0.0, 1.0, -1.0).astype(y.dtype)     # (1, 1)

    new_h = jnp.tanh(y * sign + h_state[...])
    h_state[...] = new_h          # state stays resident in VMEM across t
    out_ref[0] = new_h            # full-width (128-lane) unmasked store


def prepare_params(weight, bias):
    """One-time parameter re-layout (hoisted out of the per-call path).

    weight: (out, in) torch layout; bias: (out,).
    Returns a single packed (PARAM_ROWS, LANES) f32 buffer:
      rows 0..IN_FEATURES-1 : W^T, lane-padded with zeros
      row  IN_FEATURES      : bias, lane-padded with zeros
    """
    w_t = jnp.asarray(weight, jnp.float32).T                    # (in, out)
    wb = jnp.zeros((PARAM_ROWS, LANES), jnp.float32)
    wb = wb.at[:IN_FEATURES, :OUT_FEATURES].set(w_t)
    wb = wb.at[IN_FEATURES, :OUT_FEATURES].set(jnp.asarray(bias, jnp.float32))
    return wb


def pad_state(h):
    """Lift an (B, 4) hidden state into the lane-dense (B, LANES) layout (done once)."""
    B, F = h.shape
    return jnp.zeros((B, LANES), jnp.float32).at[:, :F].set(h)


@jax.jit
def mycell_scan(xs, h0_padded, wb):
    """Run T recurrent MyCell steps in ONE pallas_call.

    xs        : (T, B, IN_FEATURES) f32, unpadded
    h0_padded : (B, LANES) f32, output of pad_state()
    wb        : (PARAM_ROWS, LANES) f32, output of prepare_params()
    Returns   : (T, B, LANES) padded per-step states; [:, :, :4] are the values,
                [-1] is the padded final state (feed it to the next scan call).
    """
    T, B, F = xs.shape
    return pl.pallas_call(
        mycell_kernel,
        out_shape=jax.ShapeDtypeStruct((T, B, LANES), jnp.float32),
        grid_spec=pltpu.PrefetchScalarGridSpec(
            num_scalar_prefetch=0,
            grid=(T,),
            in_specs=[
                pl.BlockSpec((1, B, F), lambda t: (t, 0, 0)),            # x_t (unpadded)
                pl.BlockSpec((B, LANES), lambda t: (0, 0)),              # h0 (fetched once)
                pl.BlockSpec((PARAM_ROWS, LANES), lambda t: (0, 0)),     # packed params
            ],
            out_specs=pl.BlockSpec((1, B, LANES), lambda t: (t, 0, 0)),
            scratch_shapes=[pltpu.VMEM((B, LANES), jnp.float32)],        # resident h
        ),
        compiler_params=pltpu.CompilerParams(
            dimension_semantics=("arbitrary",)),   # true recurrence: sequential over t
    )(xs, h0_padded, wb)


def mycell_forward(x, h, wb):
    """Module-faithful single step: x, h are (B, 4); returns (new_h, new_h) of (B, 4)."""
    B, F = x.shape
    out = mycell_scan(x[None], pad_state(h), wb)   # T == 1 case of the fused scan
    new_h = out[0, :, :F]
    return new_h, new_h


def _ref_step(x, h, weight, bias):
    """Pure-JAX reference of the PyTorch forward, for correctness checks."""
    y = x @ weight.T + bias
    gated = jnp.where(jnp.sum(y) > 0.0, y, -y)
    return jnp.tanh(gated + h)


if __name__ == "__main__":
    key = jax.random.PRNGKey(0)
    k_x, k_h, k_w, k_b = jax.random.split(key, 4)

    T, B, F = 6, 8, 4  # small seq + batch, Linear(4, 4)

    xs = jax.random.normal(k_x, (T, B, F), dtype=jnp.float32)
    h0 = jax.random.normal(k_h, (B, F), dtype=jnp.float32)

    # Deterministic nn.Linear(4, 4)-style init: U(-1/sqrt(in), 1/sqrt(in))
    bound = 1.0 / jnp.sqrt(jnp.float32(F))
    weight = jax.random.uniform(k_w, (F, F), jnp.float32, -bound, bound)  # (out, in)
    bias = jax.random.uniform(k_b, (F,), jnp.float32, -bound, bound)

    wb = prepare_params(weight, bias)   # one-time layout work

    # --- Single-step forward (exact module semantics) ---------------------
    new_h, new_h2 = mycell_forward(xs[0], h0, wb)
    jax.block_until_ready(new_h)
    ref1 = _ref_step(xs[0], h0, weight, bias)
    assert jnp.allclose(new_h, ref1, atol=1e-5, rtol=1e-5), "single-step mismatch"
    assert new_h is new_h2 or bool(jnp.all(new_h == new_h2))

    # --- Fused recurrent scan: T steps, one pallas_call, h resident in VMEM
    outs = mycell_scan(xs, pad_state(h0), wb)
    jax.block_until_ready(outs)

    h_ref = h0
    refs = []
    for t in range(T):
        h_ref = _ref_step(xs[t], h_ref, weight, bias)
        refs.append(h_ref)
    refs = jnp.stack(refs)
    assert jnp.allclose(outs[:, :, :F], refs, atol=1e-5, rtol=1e-5), "scan mismatch"
    # Gate-sum invariant: padded lanes of the state must stay exactly zero.
    assert bool(jnp.all(outs[:, :, F:] == 0.0)), "padded lanes polluted"

    print("KERNEL_OK")
</pallas_src>

<mosaic_0001>
module attributes {stable_mosaic.version = 11 : i64} {
  func.func @mycell_kernel(%arg0: i32, %arg1: memref<1x8x4xf32, #tpu.memory_space<vmem>>, %arg2: memref<8x128xf32, #tpu.memory_space<vmem>>, %arg3: memref<8x128xf32, #tpu.memory_space<vmem>>, %arg4: memref<1x8x128xf32, #tpu.memory_space<vmem>>, %arg5: memref<8x128xf32, #tpu.memory_space<vmem>>) attributes {dimension_semantics = [#tpu.dimension_semantics<arbitrary>], iteration_bounds = array<i64: 1>, scalar_prefetch = 0 : i64, scratch_operands = 1 : i64, tpu.core_type = #tpu.core_type<tc>, window_params = [{transform_indices = @transform_0, window_bounds = array<i64: 1, 8, 4>}, {pipeline_mode = #tpu.pipeline_mode<synchronous>, transform_indices = @transform_1, window_bounds = array<i64: 8, 128>}, {pipeline_mode = #tpu.pipeline_mode<synchronous>, transform_indices = @transform_2, window_bounds = array<i64: 8, 128>}, {transform_indices = @transform_3, window_bounds = array<i64: 1, 8, 128>}]} {
    %c0_i32 = arith.constant 0 : i32
    %0 = arith.cmpi eq, %arg0, %c0_i32 : i32
    %1 = arith.extui %0 : i1 to i32
    %c0_i32_0 = arith.constant 0 : i32
    %2 = arith.cmpi ne, %1, %c0_i32_0 : i32
    scf.if %2 {
      %c0_15 = arith.constant 0 : index
      %c0_16 = arith.constant 0 : index
      %52 = vector.load %arg2[%c0_15, %c0_16] : memref<8x128xf32, #tpu.memory_space<vmem>>, vector<8x128xf32>
      %c0_17 = arith.constant 0 : index
      %c0_18 = arith.constant 0 : index
      %53 = vector.load %arg5[%c0_17, %c0_18] : memref<8x128xf32, #tpu.memory_space<vmem>>, vector<8x128xf32>
      tpu.vector_store %arg5[%c0_17, %c0_18], %52 {strides = array<i32>} : memref<8x128xf32, #tpu.memory_space<vmem>>, vector<8x128xf32>,
    } else {
    }
    %c0 = arith.constant 0 : index
    %c0_1 = arith.constant 0 : index
    %c0_2 = arith.constant 0 : index
    %3 = vector.load %arg1[%c0, %c0_1, %c0_2] : memref<1x8x4xf32, #tpu.memory_space<vmem>>, vector<1x8x4xf32>
    %4 = vector.shape_cast %3 : vector<1x8x4xf32> to vector<8x4xf32>
    %c0_3 = arith.constant 0 : index
    %c0_4 = arith.constant 0 : index
    %5 = vector.load %arg3[%c0_3, %c0_4] : memref<8x128xf32, #tpu.memory_space<vmem>>, vector<8x128xf32>
    %6 = vector.extract_strided_slice %5 {offsets = [4, 0], sizes = [1, 128], strides = [1, 1]} : vector<8x128xf32> to vector<1x128xf32>
    %7 = vector.extract_strided_slice %4 {offsets = [0, 0], sizes = [8, 1], strides = [1, 1]} : vector<8x4xf32> to vector<8x1xf32>
    %8 = vector.extract_strided_slice %5 {offsets = [0, 0], sizes = [1, 128], strides = [1, 1]} : vector<8x128xf32> to vector<1x128xf32>
    %9 = vector.broadcast %7 : vector<8x1xf32> to vector<8x128xf32>
    %10 = vector.broadcast %8 : vector<1x128xf32> to vector<8x128xf32>
    %11 = arith.mulf %9, %10 : vector<8x128xf32>
    %12 = vector.broadcast %6 : vector<1x128xf32> to vector<8x128xf32>
    %13 = arith.addf %12, %11 : vector<8x128xf32>
    %14 = vector.extract_strided_slice %4 {offsets = [0, 1], sizes = [8, 1], strides = [1, 1]} : vector<8x4xf32> to vector<8x1xf32>
    %15 = vector.extract_strided_slice %5 {offsets = [1, 0], sizes = [1, 128], strides = [1, 1]} : vector<8x128xf32> to vector<1x128xf32>
    %16 = vector.broadcast %14 : vector<8x1xf32> to vector<8x128xf32>
    %17 = vector.broadcast %15 : vector<1x128xf32> to vector<8x128xf32>
    %18 = arith.mulf %16, %17 : vector<8x128xf32>
    %19 = arith.addf %13, %18 : vector<8x128xf32>
    %20 = vector.extract_strided_slice %4 {offsets = [0, 2], sizes = [8, 1], strides = [1, 1]} : vector<8x4xf32> to vector<8x1xf32>
    %21 = vector.extract_strided_slice %5 {offsets = [2, 0], sizes = [1, 128], strides = [1, 1]} : vector<8x128xf32> to vector<1x128xf32>
    %22 = vector.broadcast %20 : vector<8x1xf32> to vector<8x128xf32>
    %23 = vector.broadcast %21 : vector<1x128xf32> to vector<8x128xf32>
    %24 = arith.mulf %22, %23 : vector<8x128xf32>
    %25 = arith.addf %19, %24 : vector<8x128xf32>
    %26 = vector.extract_strided_slice %4 {offsets = [0, 3], sizes = [8, 1], strides = [1, 1]} : vector<8x4xf32> to vector<8x1xf32>
    %27 = vector.extract_strided_slice %5 {offsets = [3, 0], sizes = [1, 128], strides = [1, 1]} : vector<8x128xf32> to vector<1x128xf32>
    %28 = vector.broadcast %26 : vector<8x1xf32> to vector<8x128xf32>
    %29 = vector.broadcast %27 : vector<1x128xf32> to vector<8x128xf32>
    %30 = arith.mulf %28, %29 : vector<8x128xf32>
    %31 = arith.addf %25, %30 : vector<8x128xf32>
    %32 = vector.extract_strided_slice %31 {offsets = [0, 0], sizes = [8, 4], strides = [1, 1]} : vector<8x128xf32> to vector<8x4xf32>
    %33 = vector.shape_cast %32 : vector<8x4xf32> to vector<1x8x4xf32>
    %cst = arith.constant dense<0.000000e+00> : vector<1xf32>
    %34 = vector.multi_reduction <add>, %33, %cst [1, 2] : vector<1x8x4xf32> to vector<1xf32>
    %35 = vector.shape_cast %34 : vector<1xf32> to vector<1x1x1xf32>
    %36 = vector.extract %35[0, 0, 0] : f32 from vector<1x1x1xf32>
    %37 = vector.broadcast %36 : f32 to vector<1x1xf32>
    %cst_5 = arith.constant 0.000000e+00 : f32
    %38 = vector.broadcast %cst_5 : f32 to vector<1x1xf32>
    %39 = arith.cmpf ogt, %37, %38 : vector<1x1xf32>
    %cst_6 = arith.constant 1.000000e+00 : f32
    %cst_7 = arith.constant -1.000000e+00 : f32
    %40 = vector.broadcast %cst_6 : f32 to vector<1x1xf32>
    %41 = vector.broadcast %cst_7 : f32 to vector<1x1xf32>
    %42 = arith.select %39, %40, %41 : vector<1x1xi1>, vector<1x1xf32>
    %43 = vector.broadcast %42 : vector<1x1xf32> to vector<8x128xf32>
    %44 = arith.mulf %31, %43 : vector<8x128xf32>
    %c0_8 = arith.constant 0 : index
    %c0_9 = arith.constant 0 : index
    %45 = vector.load %arg5[%c0_8, %c0_9] : memref<8x128xf32, #tpu.memory_space<vmem>>, vector<8x128xf32>
    %46 = arith.addf %44, %45 : vector<8x128xf32>
    %47 = math.tanh %46 : vector<8x128xf32>
    %c0_10 = arith.constant 0 : index
    %c0_11 = arith.constant 0 : index
    %48 = vector.load %arg5[%c0_10, %c0_11] : memref<8x128xf32, #tpu.memory_space<vmem>>, vector<8x128xf32>
    tpu.vector_store %arg5[%c0_10, %c0_11], %47 {strides = array<i32>} : memref<8x128xf32, #tpu.memory_space<vmem>>, vector<8x128xf32>,
    %c0_12 = arith.constant 0 : index
    %c0_13 = arith.constant 0 : index
    %c0_14 = arith.constant 0 : index
    %49 = vector.load %arg4[%c0_12, %c0_13, %c0_14] : memref<1x8x128xf32, #tpu.memory_space<vmem>>, vector<1x8x128xf32>
    %50 = vector.shape_cast %49 : vector<1x8x128xf32> to vector<8x128xf32>
    %51 = vector.shape_cast %47 : vector<8x128xf32> to vector<1x8x128xf32>
    tpu.vector_store %arg4[%c0_12, %c0_13, %c0_14], %51 {strides = array<i32>} : memref<1x8x128xf32, #tpu.memory_space<vmem>>, vector<1x8x128xf32>,
    return
  }
  func.func @transform_0(%arg0: i32) -> (i32, i32, i32) {
    %c0_i32 = arith.constant 0 : i32
    %c0_i32_0 = arith.constant 0 : i32
    %c0_i32_1 = arith.constant 0 : i32
    return %arg0, %c0_i32, %c0_i32_0 : i32, i32, i32
  }
  func.func @transform_1(%arg0: i32) -> (i32, i32) {
    %c0_i32 = arith.constant 0 : i32
    %c0_i32_0 = arith.constant 0 : i32
    %c0_i32_1 = arith.constant 0 : i32
    return %c0_i32, %c0_i32_0 : i32, i32
  }
  func.func @transform_2(%arg0: i32) -> (i32, i32) {
    %c0_i32 = arith.constant 0 : i32
    %c0_i32_0 = arith.constant 0 : i32
    %c0_i32_1 = arith.constant 0 : i32
    return %c0_i32, %c0_i32_0 : i32, i32
  }
  func.func @transform_3(%arg0: i32) -> (i32, i32, i32) {
    %c0_i32 = arith.constant 0 : i32
    %c0_i32_0 = arith.constant 0 : i32
    %c0_i32_1 = arith.constant 0 : i32
    return %arg0, %c0_i32, %c0_i32_0 : i32, i32, i32
  }
}

</mosaic_0001>

<llo_original>
// kernel: mycell_scan.1
$region0: #{mycell_scan.1}
  #allocation0 [shape = 'u32[]', space=smem, size = 0x4, offset = 0x4, fixed_abs, tag = 'smem constant byte address 0x4 - core index']
  #allocation1 [shape = 'u32[72,128]{1,0:T(1,128)}', space=vmem, size = 0x9000, scoped, tag = 'internal scratch']
  #allocation2 [shape = 'f32[8,128]{1,0:T(8,128)}', space=vmem, size = 0x1000, scoped, tag = 'scratch operand']
  %s0 = inlined_call_operand.vmem [shape: f32[1,8,4], index: 0, kind: input, shape index: {}]
  %s1 = inlined_call_operand.vmem [shape: f32[8,128], index: 1, kind: input, shape index: {}]
  %s2 = inlined_call_operand.hbm [shape: f32[8,128], index: 2, kind: input, shape index: {}]
  %s3 = inlined_call_operand.hbm [shape: f32[1,8,128], index: 3, kind: output, shape index: {}]
  %s4 = sld [smem:[#allocation0]]
  $region30: #{mycell_scan.1} parent=0
    _
  %s6 = ssub.s32 1, %s4
  %s7 = scalar_select 0, %s6, %s4
  $region1: #{mycell_scan.1} parent=0
    #allocation3 [shape = 'u8[4096]{0}', space=vmem, size = 0x1000, scoped, tag = 'input window, operand 2, single buffered']
    #allocation4 [shape = 's32[1]{0}', space=sflag, size = 0x4, scoped, tag = 'scoped memory for mycell_scan.1']
    #allocation5 [shape = 's32[1]{0}', space=sflag, size = 0x4, scoped, tag = 'scoped memory for mycell_scan.1']
    #allocation6 [shape = 'u8[4096]{0}', space=vmem, size = 0x1000, scoped, tag = 'output window, operand 0, single buffered']
    %8 = vsyncpa [#allocation4], 0
    %9 = vsyncpa [#allocation5], 0
    // Predicated region
    $region2: #{mycell_scan.1} parent=1 // pred_check
      _
    $region3: #{mycell_scan.1} parent=1 // pred_check_branch
      %11 = sbr.rel (0) target = $region5
    $region4: #{mycell_scan.1} parent=1 // pred_region
      _
    $region5: #{mycell_scan.1} parent=1 // pred_fallthru
      _
    // Predicated region
    $region6: #{mycell_scan.1} parent=1 // pred_check
      _
    $region7: #{mycell_scan.1} parent=1 // pred_check_branch
      %13 = sbr.rel (0) target = $region9
    $region8: #{mycell_scan.1} parent=1 // pred_region
      _
    $region9: #{mycell_scan.1} parent=1 // pred_fallthru
      _
    // Predicated region
    $region10: #{mycell_scan.1} parent=1 // pred_check
      _
    $region11: #{mycell_scan.1} parent=1 // pred_check_branch
      %15 = sbr.rel (0) target = $region13
    $region12: #{mycell_scan.1} parent=1 // pred_region
      %17 = vsyncadd [#allocation4], 0
      %s19 = sshll.u32 %s2, 4
      %s20 = int_to_ptr.hbm [resolvable:$true] %s19
      %s21 = sshll.u32 [#allocation3], 4
      %s22 = int_to_ptr.vmem [resolvable:$true] %s21
      %24 = dma.hbm_to_vmem [thread:$0]  %s20, 128, %s22, [#allocation4]
    $region13: #{mycell_scan.1} parent=1 // pred_fallthru
      _
    // Predicated region
    $region14: #{mycell_scan.1} parent=1 // pred_check
      _
    $region15: #{mycell_scan.1} parent=1 // pred_check_branch
      %26 = sbr.rel (0) target = $region17
    $region16: #{mycell_scan.1} parent=1 // pred_region
      %28 = dma.done [#allocation4], 128
    $region17: #{mycell_scan.1} parent=1 // pred_fallthru
      _
    %p29 = scmp.eq.s32.totalorder 0, 0
    // Predicated region
    $region18: #{mycell_scan.1} parent=1 // pred_check
      %p30 = pneg %p29
    $region19: #{mycell_scan.1} parent=1 // pred_check_branch
      %32 = sbr.rel (%p30) target = $region21
    $region20: #{mycell_scan.1} parent=1 // pred_region
      %v33 = vld [vmem:[%s1] sm:$0xff]
      %34 = vst [vmem:[#allocation2] sm:$0xff] %v33
    $region21: #{mycell_scan.1} parent=1 // pred_fallthru
      _
    %v35 = vld [vmem:[%s0] sm:$0xff]
    %v36 = vld [vmem:[#allocation3] sm:$0xff]
    %38 = vset.pattern.permute.xlu0 0
    %39 = vperm.xlu0 %38, %v35
    %v40 = vpop.permute.xlu0 %39
    %v42 = vperm.slane %v36, 0
    %v43 = vmul.f32 %v40, %v42
    %v44 = vperm.slane %v36, 4
    %v45 = vadd.f32 %v44, %v43
    %46 = vset.pattern.permute.xlu0 1
    %47 = vperm.xlu0 %46, %v35
    %v48 = vpop.permute.xlu0 %47
    %v50 = vperm.slane %v36, 1
    %v51 = vmul.f32 %v48, %v50
    %v52 = vadd.f32 %v45, %v51
    %53 = vset.pattern.permute.xlu0 2
    %54 = vperm.xlu0 %53, %v35
    %v55 = vpop.permute.xlu0 %54
    %v57 = vperm.slane %v36, 2
    %v58 = vmul.f32 %v55, %v57
    %v59 = vadd.f32 %v52, %v58
    %60 = vset.pattern.permute.xlu0 3
    %61 = vperm.xlu0 %60, %v35
    %v62 = vpop.permute.xlu0 %61
    %v64 = vperm.slane %v36, 3
    %v65 = vmul.f32 %v62, %v64
    %v66 = vadd.f32 %v59, %v65
    %vm67 = vcmask 31744
    %v68 = vsel %vm67, %v66, 0.0
    %69 = vadd.xlane.f32.xlu0 %v68
    %v70 = vpop.xlane.xlu0 %69
    %v71 = vrot.slane %v70, 4
    %v72 = vadd.f32 %v70, %v71
    %v73 = vrot.slane %v72, 2
    %v74 = vadd.f32 %v72, %v73
    %v75 = vrot.slane %v74, 1
    %v76 = vadd.f32 %v74, %v75
    %s77 = vtos %v76
    %v78 = vstv %s77
    %vm79 = vcmp.gt.f32.partialorder %v78, 0.0
    %v80 = vsel %vm79, 1.0, -1.0
    %v81 = vmul.f32 %v66, %v80
    %v82 = vld [vmem:[#allocation2] sm:$0xff]
    %v83 = vadd.f32 %v81, %v82
    %v84 = vtanh.pop %v83
    %85 = vst [vmem:[#allocation2] sm:$0xff] %v84
    %86 = vst [vmem:[#allocation6] sm:$0xff] %v84
    // Predicated region
    $region22: #{mycell_scan.1} parent=1 // pred_check
      _
    $region23: #{mycell_scan.1} parent=1 // pred_check_branch
      %88 = sbr.rel (0) target = $region25
    $region24: #{mycell_scan.1} parent=1 // pred_region
      %90 = vsyncadd [#allocation5], 0
      %s92 = sshll.u32 [#allocation6], 4
      %s93 = int_to_ptr.vmem [resolvable:$true] %s92
      %s94 = sshll.u32 %s3, 4
      %s95 = int_to_ptr.hbm [resolvable:$true] %s94
      %97 = dma.vmem_to_hbm [thread:$0]  %s93, 128, %s95, [#allocation5]
    $region25: #{mycell_scan.1} parent=1 // pred_fallthru
      _
    // Predicated region
    $region26: #{mycell_scan.1} parent=1 // pred_check
      _
    $region27: #{mycell_scan.1} parent=1 // pred_check_branch
      %99 = sbr.rel (0) target = $region29
    $region28: #{mycell_scan.1} parent=1 // pred_region
      %101 = dma.done [#allocation5], 128
    $region29: #{mycell_scan.1} parent=1 // pred_fallthru
      _
    %102 = vsyncpa [#allocation4], 1
    %103 = vsyncpa [#allocation5], 1

</llo_original>
